<compile_context>
chip_gen: v5e
topology: v5e:2x2
jax: 0.10.0
libtpu: 0.0.40
codegen_flags: <defaults>
</compile_context>

<pallas_src>
import math

import jax
import jax.numpy as jnp
from jax.experimental import pallas as pl
from jax.experimental.pallas import tpu as pltpu

# ----------------------------- configuration -------------------------------
FIX_POINTS = [True, False, False, True]       # fix_points given to _BatchNorm
N_POINTS = len(FIX_POINTS)                    # number of parameter copies (=4)

BATCH, NUM_FEATURES, H, W = 2, 4, 16, 16      # BatchNorm2d-style NCHW input
HW = H * W
N_ELEMS = BATCH * HW                          # per-channel reduction size
EPS = 1e-5
MOMENTUM = 0.1


# ------------------------------ Pallas kernel -------------------------------
def bn_kernel(coeffs_ref, w_ref, b_ref, x_ref, rm_ref, rv_ref,
              y_ref, l2_ref, rm_out_ref, rv_out_ref):
    """Fused curve-BatchNorm forward.

    coeffs_ref : (N_POINTS,)        f32 SMEM   curve coefficients at t
    w_ref      : (N_POINTS, C, 1)   f32 VMEM   stacked weight_j copies
    b_ref      : (N_POINTS, C, 1)   f32 VMEM   stacked bias_j copies
    x_ref      : (N, C, H*W)        f32 VMEM   input (NCHW flattened over HW)
    rm_ref     : (1, C, 1)          f32 VMEM   running_mean (in)
    rv_ref     : (1, C, 1)          f32 VMEM   running_var  (in)
    y_ref      : (N, C, H*W)        f32 VMEM   normalized output
    l2_ref     : (1, 1)             f32 SMEM   sum(w_t**2) + sum(b_t**2)
    rm_out_ref : (1, C, 1)          f32 VMEM   updated running_mean
    rv_out_ref : (1, C, 1)          f32 VMEM   updated running_var
    """
    # --- CurveModule.compute_weights_t: blend the parameter copies ----------
    # Unrolled scalar * vector accumulation (pure VPU; avoids a sublane reduce).
    w_all = w_ref[...]                               # (N_POINTS, C, 1)
    b_all = b_ref[...]
    w_t = coeffs_ref[0] * w_all[0]                   # (C, 1)
    b_t = coeffs_ref[0] * b_all[0]
    for j in range(1, N_POINTS):
        w_t = w_t + coeffs_ref[j] * w_all[j]
        b_t = b_t + coeffs_ref[j] * b_all[j]

    # l2 regularizer over the blended parameters.
    l2_ref[0, 0] = jnp.sum(w_t * w_t) + jnp.sum(b_t * b_t)

    # --- F.batch_norm (training): batch statistics over (N, H*W) per channel
    x = x_ref[...]                                   # (N, C, HW)
    inv_n = 1.0 / float(N_ELEMS)
    mean = jnp.sum(jnp.sum(x, axis=2, keepdims=True),
                   axis=0, keepdims=True) * inv_n    # (1, C, 1)
    xc = x - mean
    var = jnp.sum(jnp.sum(xc * xc, axis=2, keepdims=True),
                  axis=0, keepdims=True) * inv_n     # (1, C, 1) biased

    inv_std = jax.lax.rsqrt(var + EPS)
    y_ref[...] = xc * (inv_std * w_t) + b_t          # normalize + affine

    # Running-stat updates (PyTorch: running_var uses the unbiased variance).
    unbiased_var = var * (float(N_ELEMS) / float(N_ELEMS - 1))
    rm_out_ref[...] = (1.0 - MOMENTUM) * rm_ref[...] + MOMENTUM * mean
    rv_out_ref[...] = (1.0 - MOMENTUM) * rv_ref[...] + MOMENTUM * unbiased_var


# ------------------------------ Pallas wrapper -------------------------------
@jax.jit
def batch_norm_curve_forward(x, coeffs, weight_stack, bias_stack,
                             running_mean, running_var):
    """Training-mode curve-BatchNorm forward.

    Returns (y, l2, new_running_mean, new_running_var).
    """
    n, c, h, w = x.shape
    # Contiguous re-layouts only (no data movement): NCHW -> (N, C, H*W),
    # per-channel vectors laid out along the sublane axis as (.., C, 1) so the
    # in-kernel broadcast against (N, C, HW) needs no transpose.
    x3 = x.reshape(n, c, h * w)
    w3 = weight_stack.reshape(N_POINTS, c, 1)
    b3 = bias_stack.reshape(N_POINTS, c, 1)
    rm3 = running_mean.reshape(1, c, 1)
    rv3 = running_var.reshape(1, c, 1)

    y3, l2, rm_new, rv_new = pl.pallas_call(
        bn_kernel,
        out_shape=(
            jax.ShapeDtypeStruct((n, c, h * w), jnp.float32),
            jax.ShapeDtypeStruct((1, 1), jnp.float32),
            jax.ShapeDtypeStruct((1, c, 1), jnp.float32),
            jax.ShapeDtypeStruct((1, c, 1), jnp.float32),
        ),
        in_specs=[
            pl.BlockSpec(memory_space=pltpu.MemorySpace.SMEM),   # coeffs_t
            pl.BlockSpec(memory_space=pltpu.MemorySpace.VMEM),   # weight stack
            pl.BlockSpec(memory_space=pltpu.MemorySpace.VMEM),   # bias stack
            pl.BlockSpec(memory_space=pltpu.MemorySpace.VMEM),   # x
            pl.BlockSpec(memory_space=pltpu.MemorySpace.VMEM),   # running_mean
            pl.BlockSpec(memory_space=pltpu.MemorySpace.VMEM),   # running_var
        ],
        out_specs=(
            pl.BlockSpec(memory_space=pltpu.MemorySpace.VMEM),   # y
            pl.BlockSpec(memory_space=pltpu.MemorySpace.SMEM),   # l2
            pl.BlockSpec(memory_space=pltpu.MemorySpace.VMEM),   # new r-mean
            pl.BlockSpec(memory_space=pltpu.MemorySpace.VMEM),   # new r-var
        ),
    )(coeffs.astype(jnp.float32), w3, b3, x3, rm3, rv3)

    return (y3.reshape(n, c, h, w), l2[0, 0],
            rm_new.reshape(c), rv_new.reshape(c))


# ------------------------------- JAX glue ------------------------------------
def bezier_coeffs(t, n_points):
    """curve.get_coeffs(t): Bernstein/Bezier coefficients over all points."""
    k = n_points - 1
    j = jnp.arange(n_points, dtype=jnp.float32)
    binom = jnp.array([math.comb(k, jj) for jj in range(n_points)], jnp.float32)
    return binom * (t ** j) * ((1.0 - t) ** (k - j))


def reference_forward(x, coeffs, weight_stack, bias_stack,
                      running_mean, running_var):
    """Pure-jnp reference of the PyTorch training-mode forward."""
    w_t = jnp.einsum("j,jc->c", coeffs, weight_stack)
    b_t = jnp.einsum("j,jc->c", coeffs, bias_stack)
    l2 = jnp.sum(w_t ** 2) + jnp.sum(b_t ** 2)
    mean = jnp.mean(x, axis=(0, 2, 3))
    var = jnp.var(x, axis=(0, 2, 3))                     # biased
    y = ((x - mean[None, :, None, None])
         / jnp.sqrt(var[None, :, None, None] + EPS)
         * w_t[None, :, None, None] + b_t[None, :, None, None])
    rm_new = (1.0 - MOMENTUM) * running_mean + MOMENTUM * mean
    rv_new = (1.0 - MOMENTUM) * running_var + MOMENTUM * var * (
        N_ELEMS / (N_ELEMS - 1))
    return y, l2, rm_new, rv_new


if __name__ == "__main__":
    key = jax.random.PRNGKey(0)
    kx, kw, kt = jax.random.split(key, 3)
    x = jax.random.normal(kx, (BATCH, NUM_FEATURES, H, W), jnp.float32)

    # _BatchNorm.__init__ (affine=True): weight_i ~ U[0,1), bias_i = zeros,
    # running_mean = zeros, running_var = ones, num_batches_tracked = 0.
    weight_stack = jax.random.uniform(kw, (N_POINTS, NUM_FEATURES), jnp.float32)
    bias_stack = jnp.zeros((N_POINTS, NUM_FEATURES), jnp.float32)
    running_mean = jnp.zeros((NUM_FEATURES,), jnp.float32)
    running_var = jnp.ones((NUM_FEATURES,), jnp.float32)

    # TODO(synk): coeffs_t is produced by the enclosing curve net from a
    # sampled t ~ U(0,1); here it is a deterministic host-side input, and the
    # num_batches_tracked counter / eval-mode (use running stats) path are not
    # reproduced in-kernel.
    t = jax.random.uniform(kt, (), jnp.float32)
    coeffs = bezier_coeffs(t, N_POINTS)

    y, l2, rm_new, rv_new = batch_norm_curve_forward(
        x, coeffs, weight_stack, bias_stack, running_mean, running_var)
    jax.block_until_ready((y, l2, rm_new, rv_new))

    assert y.shape == (BATCH, NUM_FEATURES, H, W)
    assert l2.shape == ()
    assert rm_new.shape == (NUM_FEATURES,) and rv_new.shape == (NUM_FEATURES,)

    # Correctness check against a pure-jnp reference of the PyTorch forward.
    y_r, l2_r, rm_r, rv_r = reference_forward(
        x, coeffs, weight_stack, bias_stack, running_mean, running_var)
    assert jnp.allclose(y, y_r, rtol=1e-4, atol=1e-4)
    assert jnp.allclose(l2, l2_r, rtol=1e-4, atol=1e-4)
    assert jnp.allclose(rm_new, rm_r, rtol=1e-4, atol=1e-4)
    assert jnp.allclose(rv_new, rv_r, rtol=1e-4, atol=1e-4)

    print("KERNEL_OK")
</pallas_src>

<mosaic_0001>
module attributes {stable_mosaic.version = 11 : i64} {
  func.func @bn_kernel(%arg0: memref<4xf32, #tpu.memory_space<smem>>, %arg1: memref<4x4x1xf32, #tpu.memory_space<vmem>>, %arg2: memref<4x4x1xf32, #tpu.memory_space<vmem>>, %arg3: memref<2x4x256xf32, #tpu.memory_space<vmem>>, %arg4: memref<1x4x1xf32, #tpu.memory_space<vmem>>, %arg5: memref<1x4x1xf32, #tpu.memory_space<vmem>>, %arg6: memref<2x4x256xf32, #tpu.memory_space<vmem>>, %arg7: memref<1x1xf32, #tpu.memory_space<smem>>, %arg8: memref<1x4x1xf32, #tpu.memory_space<vmem>>, %arg9: memref<1x4x1xf32, #tpu.memory_space<vmem>>) attributes {dimension_semantics = [], scalar_prefetch = 0 : i64, scratch_operands = 0 : i64, tpu.core_type = #tpu.core_type<tc>} {
    %c0 = arith.constant 0 : index
    %c0_0 = arith.constant 0 : index
    %c0_1 = arith.constant 0 : index
    %0 = vector.load %arg1[%c0, %c0_0, %c0_1] : memref<4x4x1xf32, #tpu.memory_space<vmem>>, vector<4x4x1xf32>
    %c0_2 = arith.constant 0 : index
    %c0_3 = arith.constant 0 : index
    %c0_4 = arith.constant 0 : index
    %1 = vector.load %arg2[%c0_2, %c0_3, %c0_4] : memref<4x4x1xf32, #tpu.memory_space<vmem>>, vector<4x4x1xf32>
    %c0_5 = arith.constant 0 : index
    %2 = memref.load %arg0[%c0_5] : memref<4xf32, #tpu.memory_space<smem>>
    %3 = vector.extract_strided_slice %0 {offsets = [0, 0, 0], sizes = [1, 4, 1], strides = [1, 1, 1]} : vector<4x4x1xf32> to vector<1x4x1xf32>
    %4 = vector.shape_cast %3 : vector<1x4x1xf32> to vector<4x1xf32>
    %5 = vector.broadcast %2 : f32 to vector<4x1xf32>
    %6 = arith.mulf %5, %4 : vector<4x1xf32>
    %c0_6 = arith.constant 0 : index
    %7 = memref.load %arg0[%c0_6] : memref<4xf32, #tpu.memory_space<smem>>
    %8 = vector.extract_strided_slice %1 {offsets = [0, 0, 0], sizes = [1, 4, 1], strides = [1, 1, 1]} : vector<4x4x1xf32> to vector<1x4x1xf32>
    %9 = vector.shape_cast %8 : vector<1x4x1xf32> to vector<4x1xf32>
    %10 = vector.broadcast %7 : f32 to vector<4x1xf32>
    %11 = arith.mulf %10, %9 : vector<4x1xf32>
    %c1 = arith.constant 1 : index
    %12 = memref.load %arg0[%c1] : memref<4xf32, #tpu.memory_space<smem>>
    %13 = vector.extract_strided_slice %0 {offsets = [1, 0, 0], sizes = [1, 4, 1], strides = [1, 1, 1]} : vector<4x4x1xf32> to vector<1x4x1xf32>
    %14 = vector.shape_cast %13 : vector<1x4x1xf32> to vector<4x1xf32>
    %15 = vector.broadcast %12 : f32 to vector<4x1xf32>
    %16 = arith.mulf %15, %14 : vector<4x1xf32>
    %17 = arith.addf %6, %16 : vector<4x1xf32>
    %c1_7 = arith.constant 1 : index
    %18 = memref.load %arg0[%c1_7] : memref<4xf32, #tpu.memory_space<smem>>
    %19 = vector.extract_strided_slice %1 {offsets = [1, 0, 0], sizes = [1, 4, 1], strides = [1, 1, 1]} : vector<4x4x1xf32> to vector<1x4x1xf32>
    %20 = vector.shape_cast %19 : vector<1x4x1xf32> to vector<4x1xf32>
    %21 = vector.broadcast %18 : f32 to vector<4x1xf32>
    %22 = arith.mulf %21, %20 : vector<4x1xf32>
    %23 = arith.addf %11, %22 : vector<4x1xf32>
    %c2 = arith.constant 2 : index
    %24 = memref.load %arg0[%c2] : memref<4xf32, #tpu.memory_space<smem>>
    %25 = vector.extract_strided_slice %0 {offsets = [2, 0, 0], sizes = [1, 4, 1], strides = [1, 1, 1]} : vector<4x4x1xf32> to vector<1x4x1xf32>
    %26 = vector.shape_cast %25 : vector<1x4x1xf32> to vector<4x1xf32>
    %27 = vector.broadcast %24 : f32 to vector<4x1xf32>
    %28 = arith.mulf %27, %26 : vector<4x1xf32>
    %29 = arith.addf %17, %28 : vector<4x1xf32>
    %c2_8 = arith.constant 2 : index
    %30 = memref.load %arg0[%c2_8] : memref<4xf32, #tpu.memory_space<smem>>
    %31 = vector.extract_strided_slice %1 {offsets = [2, 0, 0], sizes = [1, 4, 1], strides = [1, 1, 1]} : vector<4x4x1xf32> to vector<1x4x1xf32>
    %32 = vector.shape_cast %31 : vector<1x4x1xf32> to vector<4x1xf32>
    %33 = vector.broadcast %30 : f32 to vector<4x1xf32>
    %34 = arith.mulf %33, %32 : vector<4x1xf32>
    %35 = arith.addf %23, %34 : vector<4x1xf32>
    %c3 = arith.constant 3 : index
    %36 = memref.load %arg0[%c3] : memref<4xf32, #tpu.memory_space<smem>>
    %37 = vector.extract_strided_slice %0 {offsets = [3, 0, 0], sizes = [1, 4, 1], strides = [1, 1, 1]} : vector<4x4x1xf32> to vector<1x4x1xf32>
    %38 = vector.shape_cast %37 : vector<1x4x1xf32> to vector<4x1xf32>
    %39 = vector.broadcast %36 : f32 to vector<4x1xf32>
    %40 = arith.mulf %39, %38 : vector<4x1xf32>
    %41 = arith.addf %29, %40 : vector<4x1xf32>
    %c3_9 = arith.constant 3 : index
    %42 = memref.load %arg0[%c3_9] : memref<4xf32, #tpu.memory_space<smem>>
    %43 = vector.extract_strided_slice %1 {offsets = [3, 0, 0], sizes = [1, 4, 1], strides = [1, 1, 1]} : vector<4x4x1xf32> to vector<1x4x1xf32>
    %44 = vector.shape_cast %43 : vector<1x4x1xf32> to vector<4x1xf32>
    %45 = vector.broadcast %42 : f32 to vector<4x1xf32>
    %46 = arith.mulf %45, %44 : vector<4x1xf32>
    %47 = arith.addf %35, %46 : vector<4x1xf32>
    %48 = arith.mulf %41, %41 : vector<4x1xf32>
    %49 = vector.shape_cast %48 : vector<4x1xf32> to vector<1x4x1xf32>
    %cst = arith.constant dense<0.000000e+00> : vector<1xf32>
    %50 = vector.multi_reduction <add>, %49, %cst [1, 2] : vector<1x4x1xf32> to vector<1xf32>
    %51 = vector.shape_cast %50 : vector<1xf32> to vector<1x1x1xf32>
    %52 = vector.extract %51[0, 0, 0] : f32 from vector<1x1x1xf32>
    %53 = arith.mulf %47, %47 : vector<4x1xf32>
    %54 = vector.shape_cast %53 : vector<4x1xf32> to vector<1x4x1xf32>
    %cst_10 = arith.constant dense<0.000000e+00> : vector<1xf32>
    %55 = vector.multi_reduction <add>, %54, %cst_10 [1, 2] : vector<1x4x1xf32> to vector<1xf32>
    %56 = vector.shape_cast %55 : vector<1xf32> to vector<1x1x1xf32>
    %57 = vector.extract %56[0, 0, 0] : f32 from vector<1x1x1xf32>
    %58 = arith.addf %52, %57 : f32
    %c0_11 = arith.constant 0 : index
    %c0_12 = arith.constant 0 : index
    %59 = memref.load %arg7[%c0_11, %c0_12] : memref<1x1xf32, #tpu.memory_space<smem>>
    memref.store %58, %arg7[%c0_11, %c0_12] : memref<1x1xf32, #tpu.memory_space<smem>>
    %c0_13 = arith.constant 0 : index
    %c0_14 = arith.constant 0 : index
    %c0_15 = arith.constant 0 : index
    %60 = vector.load %arg3[%c0_13, %c0_14, %c0_15] : memref<2x4x256xf32, #tpu.memory_space<vmem>>, vector<2x4x256xf32>
    %cst_16 = arith.constant dense<0.000000e+00> : vector<2x4xf32>
    %61 = vector.multi_reduction <add>, %60, %cst_16 [2] : vector<2x4x256xf32> to vector<2x4xf32>
    %62 = vector.shape_cast %61 : vector<2x4xf32> to vector<2x4x1xf32>
    %cst_17 = arith.constant dense<0.000000e+00> : vector<4x1xf32>
    %63 = vector.multi_reduction <add>, %62, %cst_17 [0] : vector<2x4x1xf32> to vector<4x1xf32>
    %64 = vector.shape_cast %63 : vector<4x1xf32> to vector<1x4x1xf32>
    %cst_18 = arith.constant 0.001953125 : f32
    %65 = vector.broadcast %cst_18 : f32 to vector<1x4x1xf32>
    %66 = arith.mulf %64, %65 : vector<1x4x1xf32>
    %67 = vector.broadcast %66 : vector<1x4x1xf32> to vector<2x4x256xf32>
    %68 = arith.subf %60, %67 : vector<2x4x256xf32>
    %69 = arith.mulf %68, %68 : vector<2x4x256xf32>
    %cst_19 = arith.constant dense<0.000000e+00> : vector<2x4xf32>
    %70 = vector.multi_reduction <add>, %69, %cst_19 [2] : vector<2x4x256xf32> to vector<2x4xf32>
    %71 = vector.shape_cast %70 : vector<2x4xf32> to vector<2x4x1xf32>
    %cst_20 = arith.constant dense<0.000000e+00> : vector<4x1xf32>
    %72 = vector.multi_reduction <add>, %71, %cst_20 [0] : vector<2x4x1xf32> to vector<4x1xf32>
    %73 = vector.shape_cast %72 : vector<4x1xf32> to vector<1x4x1xf32>
    %cst_21 = arith.constant 0.001953125 : f32
    %74 = vector.broadcast %cst_21 : f32 to vector<1x4x1xf32>
    %75 = arith.mulf %73, %74 : vector<1x4x1xf32>
    %cst_22 = arith.constant 9.99999974E-6 : f32
    %76 = vector.broadcast %cst_22 : f32 to vector<1x4x1xf32>
    %77 = arith.addf %75, %76 : vector<1x4x1xf32>
    %78 = math.rsqrt %77 : vector<1x4x1xf32>
    %79 = vector.shape_cast %41 : vector<4x1xf32> to vector<1x4x1xf32>
    %80 = arith.mulf %78, %79 : vector<1x4x1xf32>
    %81 = vector.broadcast %80 : vector<1x4x1xf32> to vector<2x4x256xf32>
    %82 = arith.mulf %68, %81 : vector<2x4x256xf32>
    %83 = vector.shape_cast %47 : vector<4x1xf32> to vector<1x4x1xf32>
    %84 = vector.broadcast %83 : vector<1x4x1xf32> to vector<2x4x256xf32>
    %85 = arith.addf %82, %84 : vector<2x4x256xf32>
    %c0_23 = arith.constant 0 : index
    %c0_24 = arith.constant 0 : index
    %c0_25 = arith.constant 0 : index
    %86 = vector.load %arg6[%c0_23, %c0_24, %c0_25] : memref<2x4x256xf32, #tpu.memory_space<vmem>>, vector<2x4x256xf32>
    tpu.vector_store %arg6[%c0_23, %c0_24, %c0_25], %85 {strides = array<i32>} : memref<2x4x256xf32, #tpu.memory_space<vmem>>, vector<2x4x256xf32>,
    %cst_26 = arith.constant 1.00195694 : f32
    %87 = vector.broadcast %cst_26 : f32 to vector<1x4x1xf32>
    %88 = arith.mulf %75, %87 : vector<1x4x1xf32>
    %c0_27 = arith.constant 0 : index
    %c0_28 = arith.constant 0 : index
    %c0_29 = arith.constant 0 : index
    %89 = vector.load %arg4[%c0_27, %c0_28, %c0_29] : memref<1x4x1xf32, #tpu.memory_space<vmem>>, vector<1x4x1xf32>
    %cst_30 = arith.constant 0.899999976 : f32
    %90 = vector.broadcast %cst_30 : f32 to vector<1x4x1xf32>
    %91 = arith.mulf %90, %89 : vector<1x4x1xf32>
    %cst_31 = arith.constant 1.000000e-01 : f32
    %92 = vector.broadcast %cst_31 : f32 to vector<1x4x1xf32>
    %93 = arith.mulf %92, %66 : vector<1x4x1xf32>
    %94 = arith.addf %91, %93 : vector<1x4x1xf32>
    %c0_32 = arith.constant 0 : index
    %c0_33 = arith.constant 0 : index
    %c0_34 = arith.constant 0 : index
    %95 = vector.load %arg8[%c0_32, %c0_33, %c0_34] : memref<1x4x1xf32, #tpu.memory_space<vmem>>, vector<1x4x1xf32>
    tpu.vector_store %arg8[%c0_32, %c0_33, %c0_34], %94 {strides = array<i32>} : memref<1x4x1xf32, #tpu.memory_space<vmem>>, vector<1x4x1xf32>,
    %c0_35 = arith.constant 0 : index
    %c0_36 = arith.constant 0 : index
    %c0_37 = arith.constant 0 : index
    %96 = vector.load %arg5[%c0_35, %c0_36, %c0_37] : memref<1x4x1xf32, #tpu.memory_space<vmem>>, vector<1x4x1xf32>
    %cst_38 = arith.constant 0.899999976 : f32
    %97 = vector.broadcast %cst_38 : f32 to vector<1x4x1xf32>
    %98 = arith.mulf %97, %96 : vector<1x4x1xf32>
    %cst_39 = arith.constant 1.000000e-01 : f32
    %99 = vector.broadcast %cst_39 : f32 to vector<1x4x1xf32>
    %100 = arith.mulf %99, %88 : vector<1x4x1xf32>
    %101 = arith.addf %98, %100 : vector<1x4x1xf32>
    %c0_40 = arith.constant 0 : index
    %c0_41 = arith.constant 0 : index
    %c0_42 = arith.constant 0 : index
    %102 = vector.load %arg9[%c0_40, %c0_41, %c0_42] : memref<1x4x1xf32, #tpu.memory_space<vmem>>, vector<1x4x1xf32>
    tpu.vector_store %arg9[%c0_40, %c0_41, %c0_42], %101 {strides = array<i32>} : memref<1x4x1xf32, #tpu.memory_space<vmem>>, vector<1x4x1xf32>,
    return
  }
}

</mosaic_0001>

<llo_original>
// kernel: batch_norm_curve_forward.1
$region0: #{batch_norm_curve_forward.1}
  #allocation0 [shape = 'u32[]', space=smem, size = 0x4, offset = 0x4, fixed_abs, tag = 'smem constant byte address 0x4 - core index']
  #allocation1 [shape = 'u32[72,128]{1,0:T(1,128)}', space=vmem, size = 0x9000, scoped, tag = 'internal scratch']
  %s0 = inlined_call_operand.vmem [shape: f32[4], index: 0, kind: input, shape index: {}]
  %s1 = inlined_call_operand.vmem [shape: f32[4,4,1], index: 1, kind: input, shape index: {}]
  %s2 = inlined_call_operand.vmem [shape: f32[4,4,1], index: 2, kind: input, shape index: {}]
  %s3 = inlined_call_operand.vmem [shape: f32[2,4,256], index: 3, kind: input, shape index: {}]
  %s4 = inlined_call_operand.vmem [shape: f32[1,4,1], index: 4, kind: input, shape index: {}]
  %s5 = inlined_call_operand.vmem [shape: f32[1,4,1], index: 5, kind: input, shape index: {}]
  %s6 = inlined_call_operand.vmem [shape: f32[2,4,256], index: 6, kind: output, shape index: {0}]
  %s7 = inlined_call_operand.hbm [shape: f32[1,1], index: 7, kind: output, shape index: {1}]
  %s8 = inlined_call_operand.vmem [shape: f32[1,4,1], index: 8, kind: output, shape index: {2}]
  %s9 = inlined_call_operand.vmem [shape: f32[1,4,1], index: 9, kind: output, shape index: {3}]
  %10 = xla_tuple %s6, %s7, %s8, %s9
  %s11 = sld [smem:[#allocation0]]
  $region62: #{batch_norm_curve_forward.1} parent=0
    _
  %s13 = ssub.s32 1, %s11
  %s14 = scalar_select 0, %s13, %s11
  $region1: #{batch_norm_curve_forward.1} parent=0
    #allocation2 [shape = 'u8[512]{0}', space=smem, size = 0x200, scoped, tag = 'input window, operand 0, single buffered']
    #allocation3 [shape = 's32[1]{0}', space=sflag, size = 0x4, scoped, tag = 'scoped memory for batch_norm_curve_forward.1']
    #allocation4 [shape = 's32[1]{0}', space=sflag, size = 0x4, scoped, tag = 'scoped memory for batch_norm_curve_forward.1']
    #allocation5 [shape = 'u8[512]{0}', space=smem, size = 0x200, scoped, tag = 'output window, operand 1, single buffered']
    %15 = vsyncpa [#allocation4], 0
    %16 = vsyncpa [#allocation3], 0
    // Predicated region
    $region2: #{batch_norm_curve_forward.1} parent=1 // pred_check
      _
    $region3: #{batch_norm_curve_forward.1} parent=1 // pred_check_branch
      %18 = sbr.rel (0) target = $region5
    $region4: #{batch_norm_curve_forward.1} parent=1 // pred_region
      %20 = vsyncadd [#allocation4], 0
      %s22 = sshll.u32 %s0, 4
      %s23 = int_to_ptr.vmem [resolvable:$true] %s22
      %25 = dma.vmem_to_smem %s23, 16, [#allocation2], [#allocation4]
    $region5: #{batch_norm_curve_forward.1} parent=1 // pred_fallthru
      _
    // Predicated region
    $region6: #{batch_norm_curve_forward.1} parent=1 // pred_check
      _
    $region7: #{batch_norm_curve_forward.1} parent=1 // pred_check_branch
      %27 = sbr.rel (0) target = $region9
    $region8: #{batch_norm_curve_forward.1} parent=1 // pred_region
      _
    $region9: #{batch_norm_curve_forward.1} parent=1 // pred_fallthru
      _
    // Predicated region
    $region10: #{batch_norm_curve_forward.1} parent=1 // pred_check
      _
    $region11: #{batch_norm_curve_forward.1} parent=1 // pred_check_branch
      %29 = sbr.rel (0) target = $region13
    $region12: #{batch_norm_curve_forward.1} parent=1 // pred_region
      _
    $region13: #{batch_norm_curve_forward.1} parent=1 // pred_fallthru
      _
    // Predicated region
    $region14: #{batch_norm_curve_forward.1} parent=1 // pred_check
      _
    $region15: #{batch_norm_curve_forward.1} parent=1 // pred_check_branch
      %31 = sbr.rel (0) target = $region17
    $region16: #{batch_norm_curve_forward.1} parent=1 // pred_region
      _
    $region17: #{batch_norm_curve_forward.1} parent=1 // pred_fallthru
      _
    // Predicated region
    $region18: #{batch_norm_curve_forward.1} parent=1 // pred_check
      _
    $region19: #{batch_norm_curve_forward.1} parent=1 // pred_check_branch
      %33 = sbr.rel (0) target = $region21
    $region20: #{batch_norm_curve_forward.1} parent=1 // pred_region
      _
    $region21: #{batch_norm_curve_forward.1} parent=1 // pred_fallthru
      _
    // Predicated region
    $region22: #{batch_norm_curve_forward.1} parent=1 // pred_check
      _
    $region23: #{batch_norm_curve_forward.1} parent=1 // pred_check_branch
      %35 = sbr.rel (0) target = $region25
    $region24: #{batch_norm_curve_forward.1} parent=1 // pred_region
      _
    $region25: #{batch_norm_curve_forward.1} parent=1 // pred_fallthru
      _
    // Predicated region
    $region26: #{batch_norm_curve_forward.1} parent=1 // pred_check
      _
    $region27: #{batch_norm_curve_forward.1} parent=1 // pred_check_branch
      %37 = sbr.rel (0) target = $region29
    $region28: #{batch_norm_curve_forward.1} parent=1 // pred_region
      %39 = dma.done [#allocation4], 16
    $region29: #{batch_norm_curve_forward.1} parent=1 // pred_fallthru
      _
    %40 = sfence
    %v41 = vld [vmem:[%s1] sm:$0xf]
    %v42 = vld [vmem:[%s1 + $0x4] sm:$0xf]
    %v43 = vld [vmem:[%s1 + $0x8] sm:$0xf]
    %v44 = vld [vmem:[%s1 + $0xc] sm:$0xf]
    %v45 = vld [vmem:[%s2] sm:$0xf]
    %v46 = vld [vmem:[%s2 + $0x4] sm:$0xf]
    %v47 = vld [vmem:[%s2 + $0x8] sm:$0xf]
    %v48 = vld [vmem:[%s2 + $0xc] sm:$0xf]
    %s49 = sld [smem:[#allocation2]]
    %v50 = vstv %s49
    %v51 = vmul.f32 %v50, %v41
    %v52 = vmul.f32 %v50, %v45
    %s53 = sld [smem:[#allocation2 + $0x1]]
    %v54 = vstv %s53
    %v55 = vmul.f32 %v54, %v42
    %v56 = vadd.f32 %v51, %v55
    %v57 = vmul.f32 %v54, %v46
    %v58 = vadd.f32 %v52, %v57
    %s59 = sld [smem:[#allocation2 + $0x2]]
    %v60 = vstv %s59
    %v61 = vmul.f32 %v60, %v43
    %v62 = vadd.f32 %v56, %v61
    %v63 = vmul.f32 %v60, %v47
    %v64 = vadd.f32 %v58, %v63
    %s65 = sld [smem:[#allocation2 + $0x3]]
    %v66 = vstv %s65
    %v67 = vmul.f32 %v66, %v44
    %v68 = vadd.f32 %v62, %v67
    %v69 = vmul.f32 %v66, %v48
    %v70 = vadd.f32 %v64, %v69
    %v71 = vmul.f32 %v68, %v68
    %vm72 = vcmask 3072
    %v73 = vsel %vm72, %v71, 0.0
    %74 = vadd.xlane.f32.xlu0 %v73
    %v75 = vpop.xlane.xlu0 %74
    %v76 = vrot.slane %v75, 4
    %v77 = vadd.f32 %v75, %v76
    %v78 = vrot.slane %v77, 2
    %v79 = vadd.f32 %v77, %v78
    %v80 = vrot.slane %v79, 1
    %v81 = vadd.f32 %v79, %v80
    %s82 = vtos %v81
    %v83 = vmul.f32 %v70, %v70
    %v84 = vsel %vm72, %v83, 0.0
    %85 = vadd.xlane.f32.xlu0 %v84
    %v86 = vpop.xlane.xlu0 %85
    %v87 = vrot.slane %v86, 4
    %v88 = vadd.f32 %v86, %v87
    %v89 = vrot.slane %v88, 2
    %v90 = vadd.f32 %v88, %v89
    %v91 = vrot.slane %v90, 1
    %v92 = vadd.f32 %v90, %v91
    %s93 = vtos %v92
    %s94 = sadd.f32 %s82, %s93
    %s95 = scalar_lea.smem [#allocation5], 0
    %96 = sst [smem:[%s95]] %s94
    %v97 = vld [vmem:[%s3] sm:$0xff]
    %v98 = vld [vmem:[%s3 + $0x8] sm:$0xff]
    %101 = vst [vmem:[#allocation1] ss:$2 sm:$0xff] %v97
    %v102 = vld.sshfl [vmem:[#allocation1] sm:$0xff pattern:$0x75316420]
    %v103 = vld.sshfl [vmem:[#allocation1 + $0x8] sm:$0xff pattern:$0x75316420]
    %s104 = scalar_lea.vmem [#allocation1], 16
    %105 = vst [vmem:[%s104] ss:$2 sm:$0xff] %v98
    %v106 = vld.sshfl [vmem:[#allocation1 + $0x10] sm:$0xff pattern:$0x75316420]
    %v107 = vld.sshfl [vmem:[#allocation1 + $0x18] sm:$0xff pattern:$0x75316420]
    %vm112 = vcmask 1043456
    %v113 = vsel %vm112, %v102, 0.0
    %v114 = vsel %vm112, %v103, 0.0
    %v115 = vadd.f32 %v113, %v114
    %116 = vadd.xlane.f32.xlu0 %v115
    %v117 = vpop.xlane.xlu0 %116
    %v118 = vsel %vm112, %v106, 0.0
    %v119 = vsel %vm112, %v107, 0.0
    %v120 = vadd.f32 %v118, %v119
    %121 = vadd.xlane.f32.xlu0 %v120
    %v122 = vpop.xlane.xlu0 %121
    %v123 = vsel %vm112, %v117, 0.0
    %v124 = vsel %vm112, %v122, 0.0
    %v125 = vadd.f32 %v123, %v124
    %v126 = vmul.f32 %v125, 0.001953125
    %v129 = vunpack.c.l.s4 839922192
    %v130 = vunpack.c.0.s8 %v129
    %v131 = vperm.slane %v126, %v130
    %v133 = vsub.f32 %v97, %v131
    %v134 = vsub.f32 %v98, %v131
    %v135 = vmul.f32 %v133, %v133
    %v136 = vmul.f32 %v134, %v134
    %139 = vst [vmem:[#allocation1] ss:$2 sm:$0xff] %v135
    %v140 = vld.sshfl [vmem:[#allocation1] sm:$0xff pattern:$0x75316420]
    %v141 = vld.sshfl [vmem:[#allocation1 + $0x8] sm:$0xff pattern:$0x75316420]
    %s142 = scalar_lea.vmem [#allocation1], 16
    %143 = vst [vmem:[%s142] ss:$2 sm:$0xff] %v136
    %v144 = vld.sshfl [vmem:[#allocation1 + $0x10] sm:$0xff pattern:$0x75316420]
    %v145 = vld.sshfl [vmem:[#allocation1 + $0x18] sm:$0xff pattern:$0x75316420]
    %v150 = vsel %vm112, %v140, 0.0
    %v151 = vsel %vm112, %v141, 0.0
    %v152 = vadd.f32 %v150, %v151
    %153 = vadd.xlane.f32.xlu0 %v152
    %v154 = vpop.xlane.xlu0 %153
    %v155 = vsel %vm112, %v144, 0.0
    %v156 = vsel %vm112, %v145, 0.0
    %v157 = vadd.f32 %v155, %v156
    %158 = vadd.xlane.f32.xlu0 %v157
    %v159 = vpop.xlane.xlu0 %158
    %v160 = vsel %vm112, %v154, 0.0
    %v161 = vsel %vm112, %v159, 0.0
    %v162 = vadd.f32 %v160, %v161
    %v163 = vmul.f32 %v162, 0.001953125
    %v164 = vadd.f32 %v163, 1e-05
    %v165 = vrsqrt.pop %v164
    %v166 = vmul.f32 %v165, %v164
    %v167 = vmul.f32 %v166, %v165
    %v168 = vmul.f32 0.5, %v167
    %v169 = vsub.f32 1.5, %v168
    %v170 = vmul.f32 %v165, %v169
    %vm171 = vweird.f32 %v164
    %vm172 = vweird.f32 %v165
    %vm173 = vmor %vm171, %vm172
    %v174 = vsel %vm173, %v165, %v170
    %v175 = vmul.f32 %v174, %v68
    %177 = vset.pattern.permute.xlu0 0
    %178 = vperm.xlu0 %177, %v175
    %v179 = vpop.permute.xlu0 %178
    %v181 = vunpack.c.l.s4 839922192
    %v182 = vunpack.c.0.s8 %v181
    %v183 = vperm.slane %v179, %v182
    %v185 = vmul.f32 %v133, %v183
    %v186 = vmul.f32 %v134, %v183
    %188 = vset.pattern.permute.xlu0 0
    %189 = vperm.xlu0 %188, %v70
    %v190 = vpop.permute.xlu0 %189
    %v192 = vunpack.c.l.s4 839922192
    %v193 = vunpack.c.0.s8 %v192
    %v194 = vperm.slane %v190, %v193
    %v196 = vadd.f32 %v185, %v194
    %v197 = vadd.f32 %v186, %v194
    %198 = vst [vmem:[%s6] sm:$0xff] %v196
    %199 = vst [vmem:[%s6 + $0x8] sm:$0xff] %v197
    %v200 = vmul.f32 %v163, 1.0019569
    %v201 = vld [vmem:[%s4] sm:$0xf]
    %v202 = vmul.f32 %v201, 0.9
    %v203 = vmul.f32 %v126, 0.1
    %v204 = vadd.f32 %v202, %v203
    %205 = vst.msk [vmem:[%s8] sm:$0xf] %vm72, %v204
    %v206 = vld [vmem:[%s5] sm:$0xf]
    %v207 = vmul.f32 %v206, 0.9
    %v208 = vmul.f32 %v200, 0.1
    %v209 = vadd.f32 %v207, %v208
    %210 = vst.msk [vmem:[%s9] sm:$0xf] %vm72, %v209
    // Predicated region
    $region30: #{batch_norm_curve_forward.1} parent=1 // pred_check
      _
    $region31: #{batch_norm_curve_forward.1} parent=1 // pred_check_branch
      %212 = sbr.rel (0) target = $region33
    $region32: #{batch_norm_curve_forward.1} parent=1 // pred_region
      _
    $region33: #{batch_norm_curve_forward.1} parent=1 // pred_fallthru
      _
    // Predicated region
    $region34: #{batch_norm_curve_forward.1} parent=1 // pred_check
      _
    $region35: #{batch_norm_curve_forward.1} parent=1 // pred_check_branch
      %214 = sbr.rel (0) target = $region37
    $region36: #{batch_norm_curve_forward.1} parent=1 // pred_region
      %216 = vsyncadd [#allocation3], 0
      %s218 = sshll.u32 %s7, 4
      %s219 = int_to_ptr.hbm [resolvable:$true] %s218
      %221 = dma.smem_to_hbm [#allocation5], 16, %s219, [#allocation3]
    $region37: #{batch_norm_curve_forward.1} parent=1 // pred_fallthru
      _
    // Predicated region
    $region38: #{batch_norm_curve_forward.1} parent=1 // pred_check
      _
    $region39: #{batch_norm_curve_forward.1} parent=1 // pred_check_branch
      %223 = sbr.rel (0) target = $region41
    $region40: #{batch_norm_curve_forward.1} parent=1 // pred_region
      _
    $region41: #{batch_norm_curve_forward.1} parent=1 // pred_fallthru
      _
    // Predicated region
    $region42: #{batch_norm_curve_forward.1} parent=1 // pred_check
      _
    $region43: #{batch_norm_curve_forward.1} parent=1 // pred_check_branch
      %225 = sbr.rel (0) target = $region45
    $region44: #{batch_norm_curve_forward.1} parent=1 // pred_region
      _
    $region45: #{batch_norm_curve_forward.1} parent=1 // pred_fallthru
      _
    // Predicated region
    $region46: #{batch_norm_curve_forward.1} parent=1 // pred_check
      _
    $region47: #{batch_norm_curve_forward.1} parent=1 // pred_check_branch
      %227 = sbr.rel (0) target = $region49
    $region48: #{batch_norm_curve_forward.1} parent=1 // pred_region
      _
    $region49: #{batch_norm_curve_forward.1} parent=1 // pred_fallthru
      _
    // Predicated region
    $region50: #{batch_norm_curve_forward.1} parent=1 // pred_check
      _
    $region51: #{batch_norm_curve_forward.1} parent=1 // pred_check_branch
      %229 = sbr.rel (0) target = $region53
    $region52: #{batch_norm_curve_forward.1} parent=1 // pred_region
      %231 = dma.done [#allocation3], 16
    $region53: #{batch_norm_curve_forward.1} parent=1 // pred_fallthru
      _
    // Predicated region
    $region54: #{batch_norm_curve_forward.1} parent=1 // pred_check
      _
    $region55: #{batch_norm_curve_forward.1} parent=1 // pred_check_branch
      %233 = sbr.rel (0) target = $region57
    $region56: #{batch_norm_curve_forward.1} parent=1 // pred_region
      _
    $region57: #{batch_norm_curve_forward.1} parent=1 // pred_fallthru
      _
    // Predicated region
    $region58: #{batch_norm_curve_forward.1} parent=1 // pred_check
      _
    $region59: #{batch_norm_curve_forward.1} parent=1 // pred_check_branch
      %235 = sbr.rel (0) target = $region61
    $region60: #{batch_norm_curve_forward.1} parent=1 // pred_region
      _
    $region61: #{batch_norm_curve_forward.1} parent=1 // pred_fallthru
      _
    %236 = sfence
    %237 = vsyncpa [#allocation3], 1
    %238 = vsyncpa [#allocation4], 1

</llo_original>
